<compile_context>
chip_gen: v7x
topology: tpu7x:2x2x1
jax: 0.10.0
libtpu: 0.0.40
codegen_flags: <defaults>
</compile_context>

<pallas_src>
import math

import jax
import jax.numpy as jnp
from jax.experimental import pallas as pl
from jax.experimental.pallas import tpu as pltpu


# ----------------------------- Pallas kernel --------------------------------
def data_embedding_kernel(x_ref, w_ref, pe_ref, o_ref):
    # x_ref : (BB, TILE_L, Kp)       bf16  im2col tile (BB batches merged into M)
    # w_ref : (Kp, d_model)          bf16  constant index_map -> resident, DMA'd once
    # pe_ref: (TILE_L, d_model)      f32   index depends on L-tile only -> no per-batch re-DMA
    # o_ref : (BB, TILE_L, d_model)  f32
    bb, tl, kp = x_ref.shape
    dm = o_ref.shape[-1]
    x2d = x_ref[...].reshape(bb * tl, kp)                       # merge batch rows into M
    acc = jnp.dot(x2d, w_ref[...], preferred_element_type=jnp.float32)
    o_ref[...] = acc.reshape(bb, tl, dm) + pe_ref[...][None, :, :]   # fused PE epilogue


# ------------------------------ helpers --------------------------------------
def _positional_embedding(length, d_model):
    """Matches PositionalEmbedding.pe[:length] (sin on even, cos on odd lanes)."""
    position = jnp.arange(length, dtype=jnp.float32)[:, None]
    div_term = jnp.exp(jnp.arange(0, d_model, 2, dtype=jnp.float32)
                       * (-(math.log(10000.0) / d_model)))
    ang = position * div_term                       # (length, d_model // 2)
    pe = jnp.zeros((length, d_model), jnp.float32)
    pe = pe.at[:, 0::2].set(jnp.sin(ang))
    pe = pe.at[:, 1::2].set(jnp.cos(ang))
    return pe


def _im2col_circular(x, pad):
    """(B, L, C) -> (B, L_out, 3C), circular k=3 im2col, static slices only."""
    B, L, C = x.shape
    L_out = L + 2 * pad - 2
    # circular halo: [x[L-pad:], x, x[:pad]]
    xh = jnp.concatenate([x[:, L - pad:, :], x, x[:, :pad, :]], axis=1)
    cols = [xh[:, k:k + L_out, :] for k in range(3)]          # each (B, L_out, C)
    return jnp.concatenate(cols, axis=-1)                     # (B, L_out, 3C)


# ------------------------------ wrapper --------------------------------------
def data_embedding_forward(x, weight, pad=1, *, tile_l=2048, target_rows=4096):
    """x: (B, L, c_in) f32; weight: (d_model, c_in, 3) f32 (Conv1d layout, bias=False).

    Returns DataEmbedding.forward(x) in eval mode: (B, L_out, d_model) f32.
    """
    B, L, C = x.shape
    d_model = weight.shape[0]
    L_out = L + 2 * pad - 2          # kernel_size=3 only
    K = 3 * C
    Kp = -(-K // 16) * 16            # pad contraction dim to a bf16-friendly multiple of 16

    # bf16 inputs, f32 accumulation inside the kernel.
    x_cat = _im2col_circular(x, pad).astype(jnp.bfloat16)               # (B, L_out, 3C)
    if Kp != K:
        x_cat = jnp.pad(x_cat, ((0, 0), (0, 0), (0, Kp - K)))
    # (d_model, C, 3) -> (3, C, d_model) -> (3C, d_model); row k*C + c == W[:, c, k]
    w2d = jnp.transpose(weight, (2, 1, 0)).reshape(K, d_model).astype(jnp.bfloat16)
    if Kp != K:
        w2d = jnp.pad(w2d, ((0, Kp - K), (0, 0)))
    pe = _positional_embedding(L_out, d_model)                          # (L_out, d_model) f32

    # Tile sizes: large L-tiles, and merge batches so each step's M ~ target_rows.
    TILE_L = L_out if L_out <= tile_l else tile_l
    if TILE_L % 8 == 0:
        BB = max(1, min(B, target_rows // max(TILE_L, 1)))
    else:
        BB = 1                        # keep the in-kernel reshape tile-aligned
    num_l = pl.cdiv(L_out, TILE_L)
    num_b = pl.cdiv(B, BB)

    # Grid ordering:
    #  * >=2 L-tiles: (L, B) with B innermost -> pe block index unchanged across
    #    consecutive steps (pipeline skips the redundant DMA), leading axis >=2.
    #  * single L-tile: (B, L) so the leading parallel axis is the batch
    #    (keeps both v7x TensorCores busy); pe index is constant anyway.
    if num_l >= 2:
        grid = (num_l, num_b)
        xmap = lambda j, b: (b, j, 0)
        pemap = lambda j, b: (j, 0)
        omap = lambda j, b: (b, j, 0)
    else:
        grid = (num_b, num_l)
        xmap = lambda b, j: (b, j, 0)
        pemap = lambda b, j: (j, 0)
        omap = lambda b, j: (b, j, 0)
    wmap = lambda *_: (0, 0)

    cost = pl.CostEstimate(
        flops=2 * B * L_out * Kp * d_model,
        bytes_accessed=(B * L_out * Kp * 2          # im2col (bf16), read once
                        + Kp * d_model * 2          # weight (bf16), resident
                        + L_out * d_model * 4       # pe (f32), read once (not per batch)
                        + B * L_out * d_model * 4), # output (f32), written once
        transcendentals=0)

    out = pl.pallas_call(
        data_embedding_kernel,
        out_shape=jax.ShapeDtypeStruct((B, L_out, d_model), jnp.float32),
        grid=grid,
        in_specs=[
            pl.BlockSpec((BB, TILE_L, Kp), xmap),          # im2col tile
            pl.BlockSpec((Kp, d_model), wmap),             # weight (resident)
            pl.BlockSpec((TILE_L, d_model), pemap),        # pos-emb tile (L-tile indexed only)
        ],
        out_specs=pl.BlockSpec((BB, TILE_L, d_model), omap),
        compiler_params=pltpu.CompilerParams(
            dimension_semantics=("parallel", "parallel"),
            vmem_limit_bytes=32 * 1024 * 1024),
        cost_estimate=cost,
    )(x_cat, w2d, pe)

    # TODO(synk): nn.Dropout(p=0.1) in training mode is stochastic; eval-mode
    # forward (identity) is implemented here.
    return out


# --------------------- deterministic parameter init --------------------------
def init_token_embedding_weight(key, c_in, d_model, kernel_size=3):
    # kaiming_normal_, mode='fan_in', nonlinearity='leaky_relu' (slope=0.01)
    fan_in = c_in * kernel_size
    gain = math.sqrt(2.0 / (1.0 + 0.01 ** 2))
    std = gain / math.sqrt(fan_in)
    return std * jax.random.normal(key, (d_model, c_in, kernel_size),
                                   dtype=jnp.float32)


# ------------------------------ reference ------------------------------------
def _reference(x, weight, pad=1):
    """Pure-JAX circular Conv1d + positional embedding (same bf16 input rounding)."""
    B, L, C = x.shape
    d_model = weight.shape[0]
    L_out = L + 2 * pad - 2
    xb = x.astype(jnp.bfloat16).astype(jnp.float32)
    wb = weight.astype(jnp.bfloat16).astype(jnp.float32)
    t = jnp.arange(L_out)
    out = jnp.zeros((B, L_out, d_model), jnp.float32)
    for k in range(3):
        xk = xb[:, (t + k - pad) % L, :]                     # (B, L_out, C)
        out = out + jnp.einsum('blc,oc->blo', xk, wb[:, :, k], precision='highest')
    return out + _positional_embedding(L_out, d_model)[None]


if __name__ == "__main__":
    key = jax.random.PRNGKey(0)
    kx, kw, kx2 = jax.random.split(key, 3)

    # small shapes consistent with the module; d_model kept 128-lane dense
    B, L, c_in, d_model, pad = 2, 16, 4, 128, 1
    x = jax.random.normal(kx, (B, L, c_in), dtype=jnp.float32)
    weight = init_token_embedding_weight(kw, c_in, d_model)

    out = data_embedding_forward(x, weight, pad=pad)
    out = jax.block_until_ready(out)

    ref = _reference(x, weight, pad=pad)
    L_out = L + 2 * pad - 2
    assert out.shape == (B, L_out, d_model)
    assert jnp.allclose(out, ref, atol=2e-3, rtol=2e-3), \
        float(jnp.max(jnp.abs(out - ref)))

    # second check: multi L-tile path with a partial last tile (L_out % TILE_L != 0)
    # and batch-merged M (exercises the reordered grid + pe reuse + masked writes).
    B2, L2 = 3, 40
    x2 = jax.random.normal(kx2, (B2, L2, c_in), dtype=jnp.float32)
    out2 = data_embedding_forward(x2, weight, pad=pad, tile_l=16)
    out2 = jax.block_until_ready(out2)
    ref2 = _reference(x2, weight, pad=pad)
    assert out2.shape == ref2.shape
    assert jnp.allclose(out2, ref2, atol=2e-3, rtol=2e-3), \
        float(jnp.max(jnp.abs(out2 - ref2)))

    print("KERNEL_OK")
</pallas_src>

<mosaic_0001>
module attributes {stable_mosaic.version = 11 : i64} {
  func.func @data_embedding_kernel(%arg0: i32, %arg1: i32, %arg2: memref<2x16x16xbf16, #tpu.memory_space<vmem>>, %arg3: memref<16x128xbf16, #tpu.memory_space<vmem>>, %arg4: memref<16x128xf32, #tpu.memory_space<vmem>>, %arg5: memref<2x16x128xf32, #tpu.memory_space<vmem>>) attributes {dimension_semantics = [#tpu.dimension_semantics<parallel>, #tpu.dimension_semantics<parallel>], iteration_bounds = array<i64: 1, 1>, scalar_prefetch = 0 : i64, scratch_operands = 0 : i64, tpu.core_type = #tpu.core_type<tc>, window_params = [{transform_indices = @transform_0, window_bounds = array<i64: 2, 16, 16>}, {pipeline_mode = #tpu.pipeline_mode<synchronous>, transform_indices = @transform_1, window_bounds = array<i64: 16, 128>}, {transform_indices = @transform_2, window_bounds = array<i64: 16, 128>}, {transform_indices = @transform_3, window_bounds = array<i64: 2, 16, 128>}]} {
    %c0 = arith.constant 0 : index
    %c0_0 = arith.constant 0 : index
    %c0_1 = arith.constant 0 : index
    %0 = vector.load %arg2[%c0, %c0_0, %c0_1] : memref<2x16x16xbf16, #tpu.memory_space<vmem>>, vector<2x16x16xbf16>
    %1 = vector.shape_cast %0 : vector<2x16x16xbf16> to vector<32x16xbf16>
    %c0_2 = arith.constant 0 : index
    %c0_3 = arith.constant 0 : index
    %2 = vector.load %arg3[%c0_2, %c0_3] : memref<16x128xbf16, #tpu.memory_space<vmem>>, vector<16x128xbf16>
    %cst = arith.constant dense<0.000000e+00> : vector<32x128xf32>
    %3 = tpu.matmul %1, %2, %cst {dimension_numbers = #tpu.dot_dimension_numbers<[1], [0], [0], [1], [0, 0, 1, 1], [], []>} : vector<32x16xbf16>, vector<16x128xbf16>, vector<32x128xf32> -> vector<32x128xf32>
    %4 = vector.shape_cast %3 : vector<32x128xf32> to vector<2x16x128xf32>
    %c0_4 = arith.constant 0 : index
    %c0_5 = arith.constant 0 : index
    %5 = vector.load %arg4[%c0_4, %c0_5] : memref<16x128xf32, #tpu.memory_space<vmem>>, vector<16x128xf32>
    %6 = vector.shape_cast %5 : vector<16x128xf32> to vector<1x16x128xf32>
    %7 = vector.broadcast %6 : vector<1x16x128xf32> to vector<2x16x128xf32>
    %8 = arith.addf %4, %7 : vector<2x16x128xf32>
    %c0_6 = arith.constant 0 : index
    %c0_7 = arith.constant 0 : index
    %c0_8 = arith.constant 0 : index
    %9 = vector.load %arg5[%c0_6, %c0_7, %c0_8] : memref<2x16x128xf32, #tpu.memory_space<vmem>>, vector<2x16x128xf32>
    tpu.vector_store %arg5[%c0_6, %c0_7, %c0_8], %8 {strides = array<i32>} : memref<2x16x128xf32, #tpu.memory_space<vmem>>, vector<2x16x128xf32>,
    return
  }
  func.func @transform_0(%arg0: i32, %arg1: i32) -> (i32, i32, i32) {
    %c0_i32 = arith.constant 0 : i32
    %c0_i32_0 = arith.constant 0 : i32
    return %arg0, %arg1, %c0_i32 : i32, i32, i32
  }
  func.func @transform_1(%arg0: i32, %arg1: i32) -> (i32, i32) {
    %c0_i32 = arith.constant 0 : i32
    %c0_i32_0 = arith.constant 0 : i32
    %c0_i32_1 = arith.constant 0 : i32
    return %c0_i32, %c0_i32_0 : i32, i32
  }
  func.func @transform_2(%arg0: i32, %arg1: i32) -> (i32, i32) {
    %c0_i32 = arith.constant 0 : i32
    %c0_i32_0 = arith.constant 0 : i32
    return %arg1, %c0_i32 : i32, i32
  }
  func.func @transform_3(%arg0: i32, %arg1: i32) -> (i32, i32, i32) {
    %c0_i32 = arith.constant 0 : i32
    %c0_i32_0 = arith.constant 0 : i32
    return %arg0, %arg1, %c0_i32 : i32, i32, i32
  }
}

</mosaic_0001>

<llo_original>
// kernel: tpu_custom_call.1
$region0: #{tpu_custom_call.1}
  #allocation0 [shape = 'u32[]', space=smem, size = 0x4, offset = 0x4, fixed_abs, tag = 'smem constant byte address 0x4 - core index']
  #allocation1 [shape = 'u32[144,128]{1,0:T(1,128)}', space=vmem, size = 0x12000, scoped, tag = 'internal scratch']
  %s0 = inlined_call_operand.hbm [shape: bf16[2,16,16], index: 0, kind: input, shape index: {}]
  %s1 = inlined_call_operand.hbm [shape: bf16[16,128], index: 1, kind: input, shape index: {}]
  %s2 = inlined_call_operand.hbm [shape: f32[16,128], index: 2, kind: input, shape index: {}]
  %s3 = inlined_call_operand.hbm [shape: f32[2,16,128], index: 3, kind: output, shape index: {}]
  %s4 = sld [smem:[#allocation0]]
  $region34: #{tpu_custom_call.1} parent=0
    _
  %s6 = ssub.s32 1, %s4
  %s7 = scalar_select 0, %s6, %s4
  $region1: #{tpu_custom_call.1} parent=0
    #allocation2 [shape = 'u8[8192]{0}', space=vmem, size = 0x2000, scoped, tag = 'input window, operand 0, single buffered']
    #allocation3 [shape = 's32[1]{0}', space=sflag, size = 0x4, scoped, tag = 'scoped memory for tpu_custom_call.1']
    #allocation4 [shape = 's32[1]{0}', space=sflag, size = 0x4, scoped, tag = 'scoped memory for tpu_custom_call.1']
    #allocation5 [shape = 'u8[4096]{0}', space=vmem, size = 0x1000, scoped, tag = 'input window, operand 1, single buffered']
    #allocation6 [shape = 's32[1]{0}', space=sflag, size = 0x4, scoped, tag = 'scoped memory for tpu_custom_call.1']
    #allocation7 [shape = 'u8[8192]{0}', space=vmem, size = 0x2000, scoped, tag = 'input window, operand 2, single buffered']
    #allocation8 [shape = 'u8[16384]{0}', space=vmem, size = 0x4000, scoped, tag = 'output window, operand 0, single buffered']
    %8 = vsyncpa [#allocation3], 0
    %9 = vsyncpa [#allocation6], 0
    %10 = vsyncpa [#allocation4], 0
    // Predicated region
    $region2: #{tpu_custom_call.1} parent=1 // pred_check
      _
    $region3: #{tpu_custom_call.1} parent=1 // pred_check_branch
      %12 = sbr.rel (0) target = $region5
    $region4: #{tpu_custom_call.1} parent=1 // pred_region
      %s14 = ssub.s32 256, 256
      %15 = vsyncadd [#allocation3], %s14
      %s16 = sshll.u32 [#allocation2], 4
      %s17 = int_to_ptr.vmem [resolvable:$true] %s16
      %22 = dma.hbm_to_vmem [thread:$0]  %s0, 256, %s17, [#allocation3], 64, 64, 4
    $region5: #{tpu_custom_call.1} parent=1 // pred_fallthru
      _
    // Predicated region
    $region6: #{tpu_custom_call.1} parent=1 // pred_check
      _
    $region7: #{tpu_custom_call.1} parent=1 // pred_check_branch
      %24 = sbr.rel (0) target = $region9
    $region8: #{tpu_custom_call.1} parent=1 // pred_region
      %s26 = ssub.s32 128, 128
      %27 = vsyncadd [#allocation6], %s26
      %s28 = sshll.u32 [#allocation5], 4
      %s29 = int_to_ptr.vmem [resolvable:$true] %s28
      %34 = dma.hbm_to_vmem [thread:$0]  %s1, 128, %s29, [#allocation6], 64, 64, 4
    $region9: #{tpu_custom_call.1} parent=1 // pred_fallthru
      _
    // Predicated region
    $region10: #{tpu_custom_call.1} parent=1 // pred_check
      _
    $region11: #{tpu_custom_call.1} parent=1 // pred_check_branch
      %36 = sbr.rel (0) target = $region13
    $region12: #{tpu_custom_call.1} parent=1 // pred_region
      %s38 = ssub.s32 256, 256
      %39 = vsyncadd [#allocation6], %s38
      %s40 = sshll.u32 [#allocation7], 4
      %s41 = int_to_ptr.vmem [resolvable:$true] %s40
      %46 = dma.hbm_to_vmem [thread:$0]  %s2, 256, %s41, [#allocation6], 128, 128, 8
    $region13: #{tpu_custom_call.1} parent=1 // pred_fallthru
      _
    // Predicated region
    $region14: #{tpu_custom_call.1} parent=1 // pred_check
      _
    $region15: #{tpu_custom_call.1} parent=1 // pred_check_branch
      %48 = sbr.rel (0) target = $region17
    $region16: #{tpu_custom_call.1} parent=1 // pred_region
      %49 = dma.done [#allocation3], 256
    $region17: #{tpu_custom_call.1} parent=1 // pred_fallthru
      _
    // Predicated region
    $region18: #{tpu_custom_call.1} parent=1 // pred_check
      _
    $region19: #{tpu_custom_call.1} parent=1 // pred_check_branch
      %51 = sbr.rel (0) target = $region21
    $region20: #{tpu_custom_call.1} parent=1 // pred_region
      %52 = dma.done [#allocation6], 128
    $region21: #{tpu_custom_call.1} parent=1 // pred_fallthru
      _
    // Predicated region
    $region22: #{tpu_custom_call.1} parent=1 // pred_check
      _
    $region23: #{tpu_custom_call.1} parent=1 // pred_check_branch
      %54 = sbr.rel (0) target = $region25
    $region24: #{tpu_custom_call.1} parent=1 // pred_region
      %55 = dma.done [#allocation6], 256
    $region25: #{tpu_custom_call.1} parent=1 // pred_fallthru
      _
    %v57 = vld [vmem:[#allocation2] sm:$0xf]
    %v58 = vld [vmem:[#allocation2 + $0x4] sm:$0xf]
    %v59 = vld [vmem:[#allocation2 + $0x8] sm:$0xf]
    %v60 = vld [vmem:[#allocation2 + $0xc] sm:$0xf]
    %v61 = vld [vmem:[#allocation5] sm:$0xf]
    %v62 = vld [vmem:[#allocation5 + $0x4] sm:$0xf]
    %v67 = vunpack.c.l.b16 %v57
    %v68 = vunpack.c.l.b16 %v58
    %v69 = vunpack.c.l.b16 %v59
    %v70 = vunpack.c.l.b16 %v60
    %v71 = vpack.c.b16 %v68, %v67
    %v72 = vpack.c.b16 %v70, %v69
    %v75 = vunpack.c.l.b16 %v61
    %v76 = vunpack.c.l.b16 %v62
    %v77 = vpack.c.b16 %v76, %v75
    %vm79 = vcmask 130048
    %v81 = vsel %vm79, %v71, 0
    %v84 = vsel %vm79, %v72, 0
    %86 = vmatprep.subr.bf16.mxu0 0
    %87 = vmatpush1.bf16.msra.mxu0 %v77
    %88 = vmatprep.subr.bf16.mxu0 0
    %89 = vmatpush1.bf16.msra.mxu0 0
    %90 = vmatprep.subr.bf16.mxu0 0
    %91 = vmatpush1.bf16.msra.mxu0 0
    %92 = vmatprep.subr.bf16.mxu0 0
    %93 = vmatpush1.bf16.msra.mxu0 0
    %94 = vmatprep.subr.bf16.mxu0 0
    %95 = vmatpush1.bf16.msra.mxu0 0
    %96 = vmatprep.subr.bf16.mxu0 0
    %97 = vmatpush1.bf16.msra.mxu0 0
    %98 = vmatprep.subr.bf16.mxu0 0
    %99 = vmatpush1.bf16.msra.mxu0 0
    %100 = vmatprep.subr.bf16.mxu0 0
    %101 = vmatpush1.bf16.msra.mxu0 0
    %102 = vmatprep.subr.bf16.mxu0 0
    %103 = vmatpush1.bf16.msra.mxu0 0
    %104 = vmatprep.subr.bf16.mxu0 0
    %105 = vmatpush1.bf16.msra.mxu0 0
    %106 = vmatprep.subr.bf16.mxu0 0
    %107 = vmatpush1.bf16.msra.mxu0 0
    %108 = vmatprep.subr.bf16.mxu0 0
    %109 = vmatpush1.bf16.msra.mxu0 0
    %110 = vmatprep.subr.bf16.mxu0 0
    %111 = vmatpush1.bf16.msra.mxu0 0
    %112 = vmatprep.subr.bf16.mxu0 0
    %113 = vmatpush1.bf16.msra.mxu0 0
    %114 = vmatprep.subr.bf16.mxu0 0
    %115 = vmatpush1.bf16.msra.mxu0 0
    %116 = vmatprep.subr.bf16.mxu0 0
    %117 = vmatpush1.bf16.msra.mxu0 0
    %118 = vmatprep.mubr.bf16.mxu0 0
    %119 = vmatmul.mubr.bf16.gmra.mrb[0].mxu0 %v81
    %v120 = vpop.f32.mrb[0].mxu0
    %v121 = vadd.f32 0.0, %v120
    %v122 = vpop.f32.mrb[0].mxu0
    %v123 = vpop.f32.mrb[0].mxu0
    %v124 = vadd.f32 0.0, %v123
    %v125 = vpop.f32.mrb[0].mxu0
    %126 = vmatprep.mubr.bf16.mxu0 0
    %127 = vmatmul.mubr.bf16.gmra.mrb[0].mxu0 %v84
    %v128 = vpop.f32.mrb[0].mxu0
    %v129 = vadd.f32 0.0, %v128
    %v130 = vpop.f32.mrb[0].mxu0
    %v131 = vpop.f32.mrb[0].mxu0
    %v132 = vadd.f32 0.0, %v131
    %v133 = vpop.f32.mrb[0].mxu0
    %134 = vdwg.mxu0
    %v135 = vld [vmem:[#allocation7] sm:$0xff]
    %v136 = vld [vmem:[#allocation7 + $0x8] sm:$0xff]
    %v137 = vadd.f32 %v121, %v135
    %v138 = vadd.f32 %v124, %v136
    %v139 = vadd.f32 %v129, %v135
    %v140 = vadd.f32 %v132, %v136
    %141 = vst [vmem:[#allocation8] sm:$0xff] %v137
    %142 = vst [vmem:[#allocation8 + $0x8] sm:$0xff] %v138
    %143 = vst [vmem:[#allocation8 + $0x10] sm:$0xff] %v139
    %144 = vst [vmem:[#allocation8 + $0x18] sm:$0xff] %v140
    // Predicated region
    $region26: #{tpu_custom_call.1} parent=1 // pred_check
      _
    $region27: #{tpu_custom_call.1} parent=1 // pred_check_branch
      %146 = sbr.rel (0) target = $region29
    $region28: #{tpu_custom_call.1} parent=1 // pred_region
      %s148 = ssub.s32 512, 512
      %149 = vsyncadd [#allocation4], %s148
      %s150 = sshll.u32 [#allocation8], 4
      %s151 = int_to_ptr.vmem [resolvable:$true] %s150
      %156 = dma.vmem_to_hbm [thread:$0]  %s151, 512, %s3, [#allocation4], 128, 128, 8
    $region29: #{tpu_custom_call.1} parent=1 // pred_fallthru
      _
    // Predicated region
    $region30: #{tpu_custom_call.1} parent=1 // pred_check
      _
    $region31: #{tpu_custom_call.1} parent=1 // pred_check_branch
      %158 = sbr.rel (0) target = $region33
    $region32: #{tpu_custom_call.1} parent=1 // pred_region
      %159 = dma.done [#allocation4], 512
    $region33: #{tpu_custom_call.1} parent=1 // pred_fallthru
      _
    %160 = vsyncpa [#allocation3], 1
    %161 = vsyncpa [#allocation6], 1
    %162 = vsyncpa [#allocation4], 1

</llo_original>
